<compile_context>
chip_gen: v6e
topology: v6e:2x2x1
jax: 0.10.0
libtpu: 0.0.40
codegen_flags: <defaults>
</compile_context>

<pallas_src>
import functools

import jax
import jax.numpy as jnp
import numpy as np
from jax.experimental import pallas as pl
from jax.experimental.pallas import tpu as pltpu

LANE = 128


def _dp_criterion_kernel(w_ref, b_ref, x_ref, t_ref, out_ref, acc_ref, *, C, rc):
    """One grid step == one batch tile of one parallel chunk ("device" replica).

    w_ref   : (C, C)              SMEM f32 -- replicated pointwise-conv weight
    b_ref   : (C,)                SMEM f32 -- replicated bias
    x_ref   : (b_tile, S, 128)    VMEM     -- natural-layout input tile  (S = C*H*W/128)
    t_ref   : (b_tile, S, 128)    VMEM     -- natural-layout target tile
    out_ref : (1, 1, 1)           VMEM f32 -- this chunk's partial sum of squared error
    acc_ref : (b_tile, S, 128)    VMEM f32 -- elementwise accumulator (per core)

    Within each sample's S rows, input channel c owns rows [c*rc, (c+1)*rc).
    """
    t_idx = pl.program_id(1)

    @pl.when(t_idx == 0)
    def _init():
        acc_ref[...] = jnp.zeros_like(acc_ref)

    # Load + upcast each input-channel slab exactly once; reuse across all C
    # output channels.  Pointwise Conv2d as VPU broadcast-FMAs: a CxC (=4x4)
    # contraction would leave the MXU <1% utilized and pay push/pop latency.
    xs = [x_ref[:, c * rc:(c + 1) * rc, :].astype(jnp.float32) for c in range(C)]

    for o in range(C):
        y = xs[0] * w_ref[o, 0] + b_ref[o]
        for c in range(1, C):
            y = y + xs[c] * w_ref[o, c]
        d = y - t_ref[:, o * rc:(o + 1) * rc, :].astype(jnp.float32)
        # Elementwise squared-error accumulation; no cross-lane reduce here.
        acc_ref[:, o * rc:(o + 1) * rc, :] = acc_ref[:, o * rc:(o + 1) * rc, :] + d * d

    # Single cross-lane/sublane reduce per chunk, on its last tile only.
    @pl.when(t_idx == pl.num_programs(1) - 1)
    def _finalize():
        out_ref[...] = jnp.sum(acc_ref[...]).reshape(1, 1, 1)


def _largest_divisor_leq(n, cap):
    cap = max(1, min(n, cap))
    best = 1
    for d in range(1, cap + 1):
        if n % d == 0:
            best = d
    return best


def _pick_num_chunks(total_tiles, n_par):
    divs = [d for d in range(1, total_tiles + 1) if total_tiles % d == 0]
    le = [d for d in divs if d <= n_par]
    num_chunks = max(le) if le else 1
    if num_chunks < 2:                       # keep both v7x TensorCores busy
        ge2 = [d for d in divs if d >= 2]
        if ge2:
            num_chunks = min(ge2)
    return num_chunks


def model_data_parallel_forward(x, target, w, b, *, num_devices=2,
                                max_block_bytes=4 * 1024 * 1024):
    """Forward of ModelDataParallell(inner_module) for the synthetic inner module.

    x, target : (B, C, H, W) (NCHW; f32 or bf16 -- bf16 halves HBM traffic)
    w         : (C, C) pointwise-conv weight
    b         : (C,)   bias
    Returns a scalar: the gathered outputs' .mean() (== global MSE).
    """
    B, C, H, W = x.shape
    assert target.shape == x.shape
    assert w.shape == (C, C) and b.shape == (C,)
    assert B % num_devices == 0, "batch must be an integer multiple of #devices"

    hw = H * W
    # TODO(synk): H*W not a multiple of 128 would need a lane-tail mask.
    assert hw % LANE == 0, "H*W must be a multiple of 128"
    rc = hw // LANE                # 128-lane rows per (sample, channel)
    S = C * rc                     # rows per sample

    # Pure view of the contiguous NCHW buffer -- no HBM copy, no transpose.
    xr = x.reshape(B, S, LANE)
    tr = target.reshape(B, S, LANE)

    itemsize = max(x.dtype.itemsize, target.dtype.itemsize)
    n_par = max(2, num_devices)
    cap_bytes = max(1, max_block_bytes // (S * LANE * itemsize))
    cap_split = max(1, B // (2 * n_par))     # leave >= 2 tiles per parallel chunk
    b_tile = _largest_divisor_leq(B, min(cap_bytes, cap_split))
    total_tiles = B // b_tile
    num_chunks = _pick_num_chunks(total_tiles, n_par)
    tiles_per_chunk = total_tiles // num_chunks

    kernel = functools.partial(_dp_criterion_kernel, C=C, rc=rc)

    partials = pl.pallas_call(
        kernel,
        out_shape=jax.ShapeDtypeStruct((num_chunks, 1, 1), jnp.float32),
        grid_spec=pltpu.PrefetchScalarGridSpec(
            num_scalar_prefetch=0,
            grid=(num_chunks, tiles_per_chunk),        # (parallel chunk, batch tile)
            in_specs=[
                pl.BlockSpec(memory_space=pltpu.MemorySpace.SMEM),   # w scalars
                pl.BlockSpec(memory_space=pltpu.MemorySpace.SMEM),   # b scalars
                pl.BlockSpec((b_tile, S, LANE),
                             lambda d, t: (d * tiles_per_chunk + t, 0, 0)),  # x
                pl.BlockSpec((b_tile, S, LANE),
                             lambda d, t: (d * tiles_per_chunk + t, 0, 0)),  # target
            ],
            out_specs=pl.BlockSpec((1, 1, 1), lambda d, t: (d, 0, 0)),
            scratch_shapes=[pltpu.VMEM((b_tile, S, LANE), jnp.float32)],
        ),
        compiler_params=pltpu.CompilerParams(
            # chunk axis is truly parallel (private partials + per-core scratch);
            # tile axis is the accumulation axis.
            dimension_semantics=("parallel", "arbitrary"),
            vmem_limit_bytes=32 * 1024 * 1024,   # plan <= ~24 MiB; v7x-safe
        ),
    )(w.astype(jnp.float32), b.astype(jnp.float32), xr, tr)

    # gather(outputs, output_device).mean(): sum per-chunk partial sums of
    # squared error and divide by the total element count.
    return jnp.sum(partials) / float(B * C * H * W)


# TODO(synk): true multi-GPU replication, threaded parallel_apply and NCCL
# gradient reduction have no single-chip Pallas equivalent; the "parallel"
# chunk grid axis + wrapper-side gather of partial sums emulate the
# scatter/replicate/gather structure.


if __name__ == "__main__":
    key = jax.random.PRNGKey(0)
    k_x, k_t, k_w, k_b = jax.random.split(key, 4)

    B, C, H, W = 8, 4, 16, 16
    num_devices = 2

    # bf16 activations/targets: halves HBM traffic of this memory-bound kernel;
    # all arithmetic inside the kernel stays f32.
    x = jax.random.normal(k_x, (B, C, H, W), dtype=jnp.float32).astype(jnp.bfloat16)
    t = jax.random.normal(k_t, (B, C, H, W), dtype=jnp.float32).astype(jnp.bfloat16)
    w = jax.random.normal(k_w, (C, C), dtype=jnp.float32) * 0.1
    b = jax.random.normal(k_b, (C,), dtype=jnp.float32) * 0.1

    fwd = jax.jit(functools.partial(model_data_parallel_forward,
                                    num_devices=num_devices))
    out = jax.block_until_ready(fwd(x, t, w, b))

    # pure-JAX reference of the same forward (scatter/apply/gather/mean), f32
    # math on the identical bf16-rounded inputs (VPU-only, no matmul precision
    # ambiguity).
    xf = x.astype(jnp.float32)
    tf = t.astype(jnp.float32)
    y_ref = jnp.sum(xf[:, None, :, :, :] * w[None, :, :, None, None], axis=2) \
        + b[None, :, None, None]
    ref = jnp.mean((y_ref - tf) ** 2)

    np.testing.assert_allclose(np.asarray(out), np.asarray(ref),
                               rtol=1e-4, atol=1e-5)
    print("KERNEL_OK")
</pallas_src>

<mosaic_0001>
module attributes {stable_mosaic.version = 11 : i64} {
  func.func @_dp_criterion_kernel(%arg0: i32, %arg1: i32, %arg2: memref<4x4xf32, #tpu.memory_space<smem>>, %arg3: memref<4xf32, #tpu.memory_space<smem>>, %arg4: memref<2x8x128xbf16, #tpu.memory_space<vmem>>, %arg5: memref<2x8x128xbf16, #tpu.memory_space<vmem>>, %arg6: memref<1x1x1xf32, #tpu.memory_space<vmem>>, %arg7: memref<2x8x128xf32, #tpu.memory_space<vmem>>) attributes {dimension_semantics = [#tpu.dimension_semantics<parallel>, #tpu.dimension_semantics<arbitrary>], iteration_bounds = array<i64: 2, 2>, scalar_prefetch = 0 : i64, scratch_operands = 1 : i64, tpu.core_type = #tpu.core_type<tc>, window_params = [{transform_indices = @transform_0, window_bounds = array<i64: 4, 4>}, {transform_indices = @transform_1, window_bounds = array<i64: 4>}, {transform_indices = @transform_2, window_bounds = array<i64: 2, 8, 128>}, {transform_indices = @transform_3, window_bounds = array<i64: 2, 8, 128>}, {transform_indices = @transform_4, window_bounds = array<i64: 1, 1, 1>}]} {
    %c0_i32 = arith.constant 0 : i32
    %0 = arith.cmpi eq, %arg1, %c0_i32 : i32
    %1 = arith.extui %0 : i1 to i32
    %c0_i32_0 = arith.constant 0 : i32
    %2 = arith.cmpi ne, %1, %c0_i32_0 : i32
    scf.if %2 {
      %cst = arith.constant 0.000000e+00 : f32
      %114 = vector.broadcast %cst : f32 to vector<2x8x128xf32>
      %c0_80 = arith.constant 0 : index
      %c0_81 = arith.constant 0 : index
      %c0_82 = arith.constant 0 : index
      %115 = vector.load %arg7[%c0_80, %c0_81, %c0_82] : memref<2x8x128xf32, #tpu.memory_space<vmem>>, vector<2x8x128xf32>
      tpu.vector_store %arg7[%c0_80, %c0_81, %c0_82], %114 {strides = array<i32>} : memref<2x8x128xf32, #tpu.memory_space<vmem>>, vector<2x8x128xf32>,
    } else {
    }
    %c0 = arith.constant 0 : index
    %c0_1 = arith.constant 0 : index
    %c0_2 = arith.constant 0 : index
    %3 = vector.load %arg4[%c0, %c0_1, %c0_2] : memref<2x8x128xbf16, #tpu.memory_space<vmem>>, vector<2x2x128xbf16>
    %4 = arith.extf %3 : vector<2x2x128xbf16> to vector<2x2x128xf32>
    %c0_3 = arith.constant 0 : index
    %c2 = arith.constant 2 : index
    %c0_4 = arith.constant 0 : index
    %5 = vector.load %arg4[%c0_3, %c2, %c0_4] : memref<2x8x128xbf16, #tpu.memory_space<vmem>>, vector<2x2x128xbf16>
    %6 = arith.extf %5 : vector<2x2x128xbf16> to vector<2x2x128xf32>
    %c0_5 = arith.constant 0 : index
    %c4 = arith.constant 4 : index
    %c0_6 = arith.constant 0 : index
    %7 = vector.load %arg4[%c0_5, %c4, %c0_6] : memref<2x8x128xbf16, #tpu.memory_space<vmem>>, vector<2x2x128xbf16>
    %8 = arith.extf %7 : vector<2x2x128xbf16> to vector<2x2x128xf32>
    %c0_7 = arith.constant 0 : index
    %c6 = arith.constant 6 : index
    %c0_8 = arith.constant 0 : index
    %9 = vector.load %arg4[%c0_7, %c6, %c0_8] : memref<2x8x128xbf16, #tpu.memory_space<vmem>>, vector<2x2x128xbf16>
    %10 = arith.extf %9 : vector<2x2x128xbf16> to vector<2x2x128xf32>
    %c0_9 = arith.constant 0 : index
    %c0_10 = arith.constant 0 : index
    %11 = memref.load %arg2[%c0_9, %c0_10] : memref<4x4xf32, #tpu.memory_space<smem>>
    %12 = vector.broadcast %11 : f32 to vector<2x2x128xf32>
    %13 = arith.mulf %4, %12 : vector<2x2x128xf32>
    %c0_11 = arith.constant 0 : index
    %14 = memref.load %arg3[%c0_11] : memref<4xf32, #tpu.memory_space<smem>>
    %15 = vector.broadcast %14 : f32 to vector<2x2x128xf32>
    %16 = arith.addf %13, %15 : vector<2x2x128xf32>
    %c0_12 = arith.constant 0 : index
    %c1 = arith.constant 1 : index
    %17 = memref.load %arg2[%c0_12, %c1] : memref<4x4xf32, #tpu.memory_space<smem>>
    %18 = vector.broadcast %17 : f32 to vector<2x2x128xf32>
    %19 = arith.mulf %6, %18 : vector<2x2x128xf32>
    %20 = arith.addf %16, %19 : vector<2x2x128xf32>
    %c0_13 = arith.constant 0 : index
    %c2_14 = arith.constant 2 : index
    %21 = memref.load %arg2[%c0_13, %c2_14] : memref<4x4xf32, #tpu.memory_space<smem>>
    %22 = vector.broadcast %21 : f32 to vector<2x2x128xf32>
    %23 = arith.mulf %8, %22 : vector<2x2x128xf32>
    %24 = arith.addf %20, %23 : vector<2x2x128xf32>
    %c0_15 = arith.constant 0 : index
    %c3 = arith.constant 3 : index
    %25 = memref.load %arg2[%c0_15, %c3] : memref<4x4xf32, #tpu.memory_space<smem>>
    %26 = vector.broadcast %25 : f32 to vector<2x2x128xf32>
    %27 = arith.mulf %10, %26 : vector<2x2x128xf32>
    %28 = arith.addf %24, %27 : vector<2x2x128xf32>
    %c0_16 = arith.constant 0 : index
    %c0_17 = arith.constant 0 : index
    %c0_18 = arith.constant 0 : index
    %29 = vector.load %arg5[%c0_16, %c0_17, %c0_18] : memref<2x8x128xbf16, #tpu.memory_space<vmem>>, vector<2x2x128xbf16>
    %30 = arith.extf %29 : vector<2x2x128xbf16> to vector<2x2x128xf32>
    %31 = arith.subf %28, %30 : vector<2x2x128xf32>
    %c0_19 = arith.constant 0 : index
    %c0_20 = arith.constant 0 : index
    %c0_21 = arith.constant 0 : index
    %32 = vector.load %arg7[%c0_19, %c0_20, %c0_21] : memref<2x8x128xf32, #tpu.memory_space<vmem>>, vector<2x2x128xf32>
    %33 = arith.mulf %31, %31 : vector<2x2x128xf32>
    %34 = arith.addf %32, %33 : vector<2x2x128xf32>
    %c0_22 = arith.constant 0 : index
    %c0_23 = arith.constant 0 : index
    %c0_24 = arith.constant 0 : index
    %35 = vector.load %arg7[%c0_22, %c0_23, %c0_24] : memref<2x8x128xf32, #tpu.memory_space<vmem>>, vector<2x2x128xf32>
    tpu.vector_store %arg7[%c0_22, %c0_23, %c0_24], %34 {strides = array<i32>} : memref<2x8x128xf32, #tpu.memory_space<vmem>>, vector<2x2x128xf32>,
    %c1_25 = arith.constant 1 : index
    %c0_26 = arith.constant 0 : index
    %36 = memref.load %arg2[%c1_25, %c0_26] : memref<4x4xf32, #tpu.memory_space<smem>>
    %37 = vector.broadcast %36 : f32 to vector<2x2x128xf32>
    %38 = arith.mulf %4, %37 : vector<2x2x128xf32>
    %c1_27 = arith.constant 1 : index
    %39 = memref.load %arg3[%c1_27] : memref<4xf32, #tpu.memory_space<smem>>
    %40 = vector.broadcast %39 : f32 to vector<2x2x128xf32>
    %41 = arith.addf %38, %40 : vector<2x2x128xf32>
    %c1_28 = arith.constant 1 : index
    %c1_29 = arith.constant 1 : index
    %42 = memref.load %arg2[%c1_28, %c1_29] : memref<4x4xf32, #tpu.memory_space<smem>>
    %43 = vector.broadcast %42 : f32 to vector<2x2x128xf32>
    %44 = arith.mulf %6, %43 : vector<2x2x128xf32>
    %45 = arith.addf %41, %44 : vector<2x2x128xf32>
    %c1_30 = arith.constant 1 : index
    %c2_31 = arith.constant 2 : index
    %46 = memref.load %arg2[%c1_30, %c2_31] : memref<4x4xf32, #tpu.memory_space<smem>>
    %47 = vector.broadcast %46 : f32 to vector<2x2x128xf32>
    %48 = arith.mulf %8, %47 : vector<2x2x128xf32>
    %49 = arith.addf %45, %48 : vector<2x2x128xf32>
    %c1_32 = arith.constant 1 : index
    %c3_33 = arith.constant 3 : index
    %50 = memref.load %arg2[%c1_32, %c3_33] : memref<4x4xf32, #tpu.memory_space<smem>>
    %51 = vector.broadcast %50 : f32 to vector<2x2x128xf32>
    %52 = arith.mulf %10, %51 : vector<2x2x128xf32>
    %53 = arith.addf %49, %52 : vector<2x2x128xf32>
    %c0_34 = arith.constant 0 : index
    %c2_35 = arith.constant 2 : index
    %c0_36 = arith.constant 0 : index
    %54 = vector.load %arg5[%c0_34, %c2_35, %c0_36] : memref<2x8x128xbf16, #tpu.memory_space<vmem>>, vector<2x2x128xbf16>
    %55 = arith.extf %54 : vector<2x2x128xbf16> to vector<2x2x128xf32>
    %56 = arith.subf %53, %55 : vector<2x2x128xf32>
    %c0_37 = arith.constant 0 : index
    %c2_38 = arith.constant 2 : index
    %c0_39 = arith.constant 0 : index
    %57 = vector.load %arg7[%c0_37, %c2_38, %c0_39] : memref<2x8x128xf32, #tpu.memory_space<vmem>>, vector<2x2x128xf32>
    %58 = arith.mulf %56, %56 : vector<2x2x128xf32>
    %59 = arith.addf %57, %58 : vector<2x2x128xf32>
    %c0_40 = arith.constant 0 : index
    %c2_41 = arith.constant 2 : index
    %c0_42 = arith.constant 0 : index
    %60 = vector.load %arg7[%c0_40, %c2_41, %c0_42] : memref<2x8x128xf32, #tpu.memory_space<vmem>>, vector<2x2x128xf32>
    tpu.vector_store %arg7[%c0_40, %c2_41, %c0_42], %59 {strides = array<i32>} : memref<2x8x128xf32, #tpu.memory_space<vmem>>, vector<2x2x128xf32>,
    %c2_43 = arith.constant 2 : index
    %c0_44 = arith.constant 0 : index
    %61 = memref.load %arg2[%c2_43, %c0_44] : memref<4x4xf32, #tpu.memory_space<smem>>
    %62 = vector.broadcast %61 : f32 to vector<2x2x128xf32>
    %63 = arith.mulf %4, %62 : vector<2x2x128xf32>
    %c2_45 = arith.constant 2 : index
    %64 = memref.load %arg3[%c2_45] : memref<4xf32, #tpu.memory_space<smem>>
    %65 = vector.broadcast %64 : f32 to vector<2x2x128xf32>
    %66 = arith.addf %63, %65 : vector<2x2x128xf32>
    %c2_46 = arith.constant 2 : index
    %c1_47 = arith.constant 1 : index
    %67 = memref.load %arg2[%c2_46, %c1_47] : memref<4x4xf32, #tpu.memory_space<smem>>
    %68 = vector.broadcast %67 : f32 to vector<2x2x128xf32>
    %69 = arith.mulf %6, %68 : vector<2x2x128xf32>
    %70 = arith.addf %66, %69 : vector<2x2x128xf32>
    %c2_48 = arith.constant 2 : index
    %c2_49 = arith.constant 2 : index
    %71 = memref.load %arg2[%c2_48, %c2_49] : memref<4x4xf32, #tpu.memory_space<smem>>
    %72 = vector.broadcast %71 : f32 to vector<2x2x128xf32>
    %73 = arith.mulf %8, %72 : vector<2x2x128xf32>
    %74 = arith.addf %70, %73 : vector<2x2x128xf32>
    %c2_50 = arith.constant 2 : index
    %c3_51 = arith.constant 3 : index
    %75 = memref.load %arg2[%c2_50, %c3_51] : memref<4x4xf32, #tpu.memory_space<smem>>
    %76 = vector.broadcast %75 : f32 to vector<2x2x128xf32>
    %77 = arith.mulf %10, %76 : vector<2x2x128xf32>
    %78 = arith.addf %74, %77 : vector<2x2x128xf32>
    %c0_52 = arith.constant 0 : index
    %c4_53 = arith.constant 4 : index
    %c0_54 = arith.constant 0 : index
    %79 = vector.load %arg5[%c0_52, %c4_53, %c0_54] : memref<2x8x128xbf16, #tpu.memory_space<vmem>>, vector<2x2x128xbf16>
    %80 = arith.extf %79 : vector<2x2x128xbf16> to vector<2x2x128xf32>
    %81 = arith.subf %78, %80 : vector<2x2x128xf32>
    %c0_55 = arith.constant 0 : index
    %c4_56 = arith.constant 4 : index
    %c0_57 = arith.constant 0 : index
    %82 = vector.load %arg7[%c0_55, %c4_56, %c0_57] : memref<2x8x128xf32, #tpu.memory_space<vmem>>, vector<2x2x128xf32>
    %83 = arith.mulf %81, %81 : vector<2x2x128xf32>
    %84 = arith.addf %82, %83 : vector<2x2x128xf32>
    %c0_58 = arith.constant 0 : index
    %c4_59 = arith.constant 4 : index
    %c0_60 = arith.constant 0 : index
    %85 = vector.load %arg7[%c0_58, %c4_59, %c0_60] : memref<2x8x128xf32, #tpu.memory_space<vmem>>, vector<2x2x128xf32>
    tpu.vector_store %arg7[%c0_58, %c4_59, %c0_60], %84 {strides = array<i32>} : memref<2x8x128xf32, #tpu.memory_space<vmem>>, vector<2x2x128xf32>,
    %c3_61 = arith.constant 3 : index
    %c0_62 = arith.constant 0 : index
    %86 = memref.load %arg2[%c3_61, %c0_62] : memref<4x4xf32, #tpu.memory_space<smem>>
    %87 = vector.broadcast %86 : f32 to vector<2x2x128xf32>
    %88 = arith.mulf %4, %87 : vector<2x2x128xf32>
    %c3_63 = arith.constant 3 : index
    %89 = memref.load %arg3[%c3_63] : memref<4xf32, #tpu.memory_space<smem>>
    %90 = vector.broadcast %89 : f32 to vector<2x2x128xf32>
    %91 = arith.addf %88, %90 : vector<2x2x128xf32>
    %c3_64 = arith.constant 3 : index
    %c1_65 = arith.constant 1 : index
    %92 = memref.load %arg2[%c3_64, %c1_65] : memref<4x4xf32, #tpu.memory_space<smem>>
    %93 = vector.broadcast %92 : f32 to vector<2x2x128xf32>
    %94 = arith.mulf %6, %93 : vector<2x2x128xf32>
    %95 = arith.addf %91, %94 : vector<2x2x128xf32>
    %c3_66 = arith.constant 3 : index
    %c2_67 = arith.constant 2 : index
    %96 = memref.load %arg2[%c3_66, %c2_67] : memref<4x4xf32, #tpu.memory_space<smem>>
    %97 = vector.broadcast %96 : f32 to vector<2x2x128xf32>
    %98 = arith.mulf %8, %97 : vector<2x2x128xf32>
    %99 = arith.addf %95, %98 : vector<2x2x128xf32>
    %c3_68 = arith.constant 3 : index
    %c3_69 = arith.constant 3 : index
    %100 = memref.load %arg2[%c3_68, %c3_69] : memref<4x4xf32, #tpu.memory_space<smem>>
    %101 = vector.broadcast %100 : f32 to vector<2x2x128xf32>
    %102 = arith.mulf %10, %101 : vector<2x2x128xf32>
    %103 = arith.addf %99, %102 : vector<2x2x128xf32>
    %c0_70 = arith.constant 0 : index
    %c6_71 = arith.constant 6 : index
    %c0_72 = arith.constant 0 : index
    %104 = vector.load %arg5[%c0_70, %c6_71, %c0_72] : memref<2x8x128xbf16, #tpu.memory_space<vmem>>, vector<2x2x128xbf16>
    %105 = arith.extf %104 : vector<2x2x128xbf16> to vector<2x2x128xf32>
    %106 = arith.subf %103, %105 : vector<2x2x128xf32>
    %c0_73 = arith.constant 0 : index
    %c6_74 = arith.constant 6 : index
    %c0_75 = arith.constant 0 : index
    %107 = vector.load %arg7[%c0_73, %c6_74, %c0_75] : memref<2x8x128xf32, #tpu.memory_space<vmem>>, vector<2x2x128xf32>
    %108 = arith.mulf %106, %106 : vector<2x2x128xf32>
    %109 = arith.addf %107, %108 : vector<2x2x128xf32>
    %c0_76 = arith.constant 0 : index
    %c6_77 = arith.constant 6 : index
    %c0_78 = arith.constant 0 : index
    %110 = vector.load %arg7[%c0_76, %c6_77, %c0_78] : memref<2x8x128xf32, #tpu.memory_space<vmem>>, vector<2x2x128xf32>
    tpu.vector_store %arg7[%c0_76, %c6_77, %c0_78], %109 {strides = array<i32>} : memref<2x8x128xf32, #tpu.memory_space<vmem>>, vector<2x2x128xf32>,
    %c1_i32 = arith.constant 1 : i32
    %111 = arith.cmpi eq, %arg1, %c1_i32 : i32
    %112 = arith.extui %111 : i1 to i32
    %c0_i32_79 = arith.constant 0 : i32
    %113 = arith.cmpi ne, %112, %c0_i32_79 : i32
    scf.if %113 {
      %c0_80 = arith.constant 0 : index
      %c0_81 = arith.constant 0 : index
      %c0_82 = arith.constant 0 : index
      %114 = vector.load %arg7[%c0_80, %c0_81, %c0_82] : memref<2x8x128xf32, #tpu.memory_space<vmem>>, vector<2x8x128xf32>
      %115 = vector.shape_cast %114 : vector<2x8x128xf32> to vector<1x2x8x128xf32>
      %cst = arith.constant dense<0.000000e+00> : vector<1xf32>
      %116 = vector.multi_reduction <add>, %115, %cst [1, 2, 3] : vector<1x2x8x128xf32> to vector<1xf32>
      %117 = vector.shape_cast %116 : vector<1xf32> to vector<1x1x1x1xf32>
      %118 = vector.extract %117[0, 0, 0, 0] : f32 from vector<1x1x1x1xf32>
      %119 = vector.broadcast %118 : f32 to vector<1x1x1xf32>
      %c0_83 = arith.constant 0 : index
      %c0_84 = arith.constant 0 : index
      %c0_85 = arith.constant 0 : index
      %120 = vector.load %arg6[%c0_83, %c0_84, %c0_85] : memref<1x1x1xf32, #tpu.memory_space<vmem>>, vector<1x1x1xf32>
      tpu.vector_store %arg6[%c0_83, %c0_84, %c0_85], %119 {strides = array<i32>} : memref<1x1x1xf32, #tpu.memory_space<vmem>>, vector<1x1x1xf32>,
    } else {
    }
    return
  }
  func.func @transform_0(%arg0: i32, %arg1: i32) -> (i32, i32) {
    %c0_i32 = arith.constant 0 : i32
    %c0_i32_0 = arith.constant 0 : i32
    %c0_i32_1 = arith.constant 0 : i32
    return %c0_i32, %c0_i32_0 : i32, i32
  }
  func.func @transform_1(%arg0: i32, %arg1: i32) -> i32 {
    %c0_i32 = arith.constant 0 : i32
    %c0_i32_0 = arith.constant 0 : i32
    return %c0_i32 : i32
  }
  func.func @transform_2(%arg0: i32, %arg1: i32) -> (i32, i32, i32) {
    %c2_i32 = arith.constant 2 : i32
    %0 = arith.muli %arg0, %c2_i32 : i32
    %1 = arith.addi %0, %arg1 : i32
    %c0_i32 = arith.constant 0 : i32
    %c0_i32_0 = arith.constant 0 : i32
    %c0_i32_1 = arith.constant 0 : i32
    return %1, %c0_i32, %c0_i32_0 : i32, i32, i32
  }
  func.func @transform_3(%arg0: i32, %arg1: i32) -> (i32, i32, i32) {
    %c2_i32 = arith.constant 2 : i32
    %0 = arith.muli %arg0, %c2_i32 : i32
    %1 = arith.addi %0, %arg1 : i32
    %c0_i32 = arith.constant 0 : i32
    %c0_i32_0 = arith.constant 0 : i32
    %c0_i32_1 = arith.constant 0 : i32
    return %1, %c0_i32, %c0_i32_0 : i32, i32, i32
  }
  func.func @transform_4(%arg0: i32, %arg1: i32) -> (i32, i32, i32) {
    %c0_i32 = arith.constant 0 : i32
    %c0_i32_0 = arith.constant 0 : i32
    %c0_i32_1 = arith.constant 0 : i32
    return %arg0, %c0_i32, %c0_i32_0 : i32, i32, i32
  }
}

</mosaic_0001>

<llo_original>
// kernel: model_data_parallel_forward.1
$region0: #{model_data_parallel_forward.1}
  #allocation0 [shape = 'u32[]', space=smem, size = 0x4, offset = 0x4, fixed_abs, tag = 'smem constant byte address 0x4 - core index']
  #allocation1 [shape = 'u32[144,128]{1,0:T(1,128)}', space=vmem, size = 0x12000, scoped, tag = 'internal scratch']
  #allocation2 [shape = 'f32[2,8,128]{2,1,0:T(8,128)}', space=vmem, size = 0x2000, scoped, tag = 'scratch operand']
  %s0 = inlined_call_operand.vmem [shape: f32[4,4], index: 0, kind: input, shape index: {}]
  %s1 = inlined_call_operand.vmem [shape: f32[4], index: 1, kind: input, shape index: {}]
  %s2 = inlined_call_operand.vmem [shape: bf16[8,8,128], index: 2, kind: input, shape index: {}]
  %s3 = inlined_call_operand.vmem [shape: bf16[8,8,128], index: 3, kind: input, shape index: {}]
  %s4 = inlined_call_operand.vmem [shape: f32[2,1,1], index: 4, kind: output, shape index: {}]
  %s5 = sld [smem:[#allocation0]]
  $region65: #{model_data_parallel_forward.1} parent=0
    _
  %s7 = ssub.s32 1, %s5
  %s8 = scalar_select 0, %s7, %s5
  $region1: #{model_data_parallel_forward.1} parent=0
    #allocation3 [shape = 'u8[2048]{0}', space=smem, size = 0x800, scoped, tag = 'input window, operand 0, single buffered']
    #allocation4 [shape = 's32[2]{0}', space=sflag, size = 0x8, scoped, tag = 'scoped memory for model_data_parallel_forward.1']
    #allocation5 [shape = 'u8[512]{0}', space=smem, size = 0x200, scoped, tag = 'input window, operand 1, single buffered']
    #allocation6 [shape = 's32[1]{0}', space=sflag, size = 0x4, scoped, tag = 'scoped memory for model_data_parallel_forward.1']
    %9 = vsyncpa [#allocation4], 0
    %10 = vsyncpa [#allocation6], 0
    loop: start=0, step=1, limit=6
    $region2: #{model_data_parallel_forward.1} parent=1 // loop_pre_header
      _
    $region3: #{model_data_parallel_forward.1} parent=1 // loop_header
      %s12 = sphi 0, %s16
      %p13 = scmp.ge.s32.totalorder %s12, 6
      %s19 = sphi 0, %s31
      %s20 = sphi 0, %s27
      %s21 = sphi 0, %s19
      %s22 = sphi 0, %s20
      %s23 = sphi 0, %s21
      %s24 = sphi 0, %s22
      %s32 = sphi 0, %s32
      %s34 = sphi 0, %s32
      %s35 = sphi 0, %s34
      %s49 = sphi 0, %s35
      %s53 = sphi 0, %s53
      %s55 = sphi 0, %s53
      %s56 = sphi 0, %s55
      %s70 = sphi 0, %s56
      %s80 = sphi 0, %s82
      %s83 = sphi 0, %s80
      %s84 = sphi 0, %s83
      %s100 = sphi 0, %s84
      %s110 = sphi 0, %s112
      %s113 = sphi 0, %s110
      %s114 = sphi 0, %s113
      %s130 = sphi 0, %s114
      %s136 = sphi 0, %s138
      %s139 = sphi 0, %s136
      %s140 = sphi 0, %s139
      %s156 = sphi 0, %s140
    $region4: #{model_data_parallel_forward.1} parent=1 // loop_header_branch
      %15 = sbr.rel (%p13) target = $region8
    $region5: #{model_data_parallel_forward.1} parent=1 // loop_body
      %s17 = ssub.s32 %s12, 1
      %s18 = ssub.s32 %s12, 2
      %s25 = sadd.s32 1, %s20
      %p26 = scmp.ge.s32.totalorder %s25, 2
      %s27 = scalar_select %p26, 0, %s25
      %s28 = sadd.s32 1, %s19
      %s29 = scalar_select %p26, %s28, %s19
      %p30 = scmp.ge.s32.totalorder %s29, 2
      %s31 = scalar_select %p30, 0, %s29
      %s33 = sadd.s32 %s32, 1
      %p36 = scmp.eq.s32.totalorder %s12, 3
      %p37 = scmp.ne.s32.totalorder %s32, %s34
      %p38 = scmp.eq.s32.totalorder %s12, 0
      %p39 = por %p37, %p38
      %p40 = scmp.ne.s32.totalorder %s32, %s34
      %p41 = scmp.eq.s32.totalorder %s17, 3
      %p42 = por %p40, %p41
      %p43 = scmp.ne.s32.totalorder %s34, %s35
      %p44 = scmp.eq.s32.totalorder %s17, 0
      %p45 = por %p43, %p44
      %p46 = scmp.ne.s32.totalorder %s34, %s35
      %p47 = scmp.eq.s32.totalorder %s18, 3
      %p48 = por %p46, %p47
      %p50 = scmp.ne.s32.totalorder %s35, %s49
      %p51 = scmp.eq.s32.totalorder %s18, 0
      %p52 = por %p50, %p51
      %s54 = sadd.s32 %s53, 1
      %p57 = scmp.eq.s32.totalorder %s12, 3
      %p58 = scmp.ne.s32.totalorder %s53, %s55
      %p59 = scmp.eq.s32.totalorder %s12, 0
      %p60 = por %p58, %p59
      %p61 = scmp.ne.s32.totalorder %s53, %s55
      %p62 = scmp.eq.s32.totalorder %s17, 3
      %p63 = por %p61, %p62
      %p64 = scmp.ne.s32.totalorder %s55, %s56
      %p65 = scmp.eq.s32.totalorder %s17, 0
      %p66 = por %p64, %p65
      %p67 = scmp.ne.s32.totalorder %s55, %s56
      %p68 = scmp.eq.s32.totalorder %s18, 3
      %p69 = por %p67, %p68
      %p71 = scmp.ne.s32.totalorder %s56, %s70
      %p72 = scmp.eq.s32.totalorder %s18, 0
      %p73 = por %p71, %p72
      %s74 = smul.u32 %s19, 2
      %s75 = sadd.s32 %s74, %s20
      %s76 = smul.u32 %s31, 2
      %s77 = sadd.s32 %s76, %s27
      %s78 = ssub.s32 %s75, %s77
      %p79 = scmp.eq.s32.totalorder %s78, 0
      %s81 = sadd.s32 %s80, 1
      %s82 = scalar_select %p79, %s80, %s81
      %p85 = pneg %p79
      %p86 = scmp.eq.s32.totalorder %s12, 3
      %p87 = por %p85, %p86
      %p88 = scmp.ne.s32.totalorder %s80, %s83
      %p89 = scmp.eq.s32.totalorder %s12, 0
      %p90 = por %p88, %p89
      %p91 = scmp.ne.s32.totalorder %s80, %s83
      %p92 = scmp.eq.s32.totalorder %s17, 3
      %p93 = por %p91, %p92
      %p94 = scmp.ne.s32.totalorder %s83, %s84
      %p95 = scmp.eq.s32.totalorder %s17, 0
      %p96 = por %p94, %p95
      %p97 = scmp.ne.s32.totalorder %s83, %s84
      %p98 = scmp.eq.s32.totalorder %s18, 3
      %p99 = por %p97, %p98
      %p101 = scmp.ne.s32.totalorder %s84, %s100
      %p102 = scmp.eq.s32.totalorder %s18, 0
      %p103 = por %p101, %p102
      %s104 = smul.u32 %s19, 2
      %s105 = sadd.s32 %s104, %s20
      %s106 = smul.u32 %s31, 2
      %s107 = sadd.s32 %s106, %s27
      %s108 = ssub.s32 %s105, %s107
      %p109 = scmp.eq.s32.totalorder %s108, 0
      %s111 = sadd.s32 %s110, 1
      %s112 = scalar_select %p109, %s110, %s111
      %p115 = pneg %p109
      %p116 = scmp.eq.s32.totalorder %s12, 3
      %p117 = por %p115, %p116
      %p118 = scmp.ne.s32.totalorder %s110, %s113
      %p119 = scmp.eq.s32.totalorder %s12, 0
      %p120 = por %p118, %p119
      %p121 = scmp.ne.s32.totalorder %s110, %s113
      %p122 = scmp.eq.s32.totalorder %s17, 3
      %p123 = por %p121, %p122
      %p124 = scmp.ne.s32.totalorder %s113, %s114
      %p125 = scmp.eq.s32.totalorder %s17, 0
      %p126 = por %p124, %p125
      %p127 = scmp.ne.s32.totalorder %s113, %s114
      %p128 = scmp.eq.s32.totalorder %s18, 3
      %p129 = por %p127, %p128
      %p131 = scmp.ne.s32.totalorder %s114, %s130
      %p132 = scmp.eq.s32.totalorder %s18, 0
      %p133 = por %p131, %p132
      %s134 = ssub.s32 %s19, %s31
      %p135 = scmp.eq.s32.totalorder %s134, 0
      %s137 = sadd.s32 %s136, 1
      %s138 = scalar_select %p135, %s136, %s137
      %p141 = pneg %p135
      %p142 = scmp.eq.s32.totalorder %s12, 3
      %p143 = por %p141, %p142
      %p144 = scmp.ne.s32.totalorder %s136, %s139
      %p145 = scmp.eq.s32.totalorder %s12, 0
      %p146 = por %p144, %p145
      %p147 = scmp.ne.s32.totalorder %s136, %s139
      %p148 = scmp.eq.s32.totalorder %s17, 3
      %p149 = por %p147, %p148
      %p150 = scmp.ne.s32.totalorder %s139, %s140
      %p151 = scmp.eq.s32.totalorder %s17, 0
      %p152 = por %p150, %p151
      %p153 = scmp.ne.s32.totalorder %s139, %s140
      %p154 = scmp.eq.s32.totalorder %s18, 3
      %p155 = por %p153, %p154
      %p157 = scmp.ne.s32.totalorder %s140, %s156
      %p158 = scmp.eq.s32.totalorder %s18, 0
      %p159 = por %p157, %p158
      %p160 = scmp.le.s32.totalorder 1, %s12
      %p161 = scmp.lt.s32.totalorder %s12, 5
      %p162 = pnand %p160, %p161
      %p163 = pneg %p162
      // Predicated region
      $region9: #{model_data_parallel_forward.1} parent=5 // pred_check
        _
      $region10: #{model_data_parallel_forward.1} parent=5 // pred_check_branch
        %165 = sbr.rel (%p162) target = $region12
      $region11: #{model_data_parallel_forward.1} parent=5 // pred_region
        %s166 = ssub.s32 %s12, 1
        // Predicated region
        $region13: #{model_data_parallel_forward.1} parent=11 // pred_check
          %p167 = pneg %p45
        $region14: #{model_data_parallel_forward.1} parent=11 // pred_check_branch
          %169 = sbr.rel (%p167) target = $region16
        $region15: #{model_data_parallel_forward.1} parent=11 // pred_region
          %s171 = ssub.s32 64, 64
          %172 = vsyncadd [#allocation4], %s171
          %s174 = sshll.u32 %s0, 4
          %s175 = int_to_ptr.vmem [resolvable:$true] %s174
          %177 = dma.vmem_to_smem %s175, 64, [#allocation3], [#allocation4]
        $region16: #{model_data_parallel_forward.1} parent=11 // pred_fallthru
          _
        // Predicated region
        $region17: #{model_data_parallel_forward.1} parent=11 // pred_check
          %p178 = pneg %p66
        $region18: #{model_data_parallel_forward.1} parent=11 // pred_check_branch
          %180 = sbr.rel (%p178) target = $region20
        $region19: #{model_data_parallel_forward.1} parent=11 // pred_region
          %s182 = ssub.s32 16, 16
          %183 = vsyncadd [#allocation6], %s182
          %s185 = sshll.u32 %s1, 4
          %s186 = int_to_ptr.vmem [resolvable:$true] %s185
          %188 = dma.vmem_to_smem %s186, 16, [#allocation5], [#allocation6]
        $region20: #{model_data_parallel_forward.1} parent=11 // pred_fallthru
          _
      $region12: #{model_data_parallel_forward.1} parent=5 // pred_fallthru
        _
      %p189 = scmp.lt.s32.totalorder %s12, 4
      // Predicated region
      $region21: #{model_data_parallel_forward.1} parent=5 // pred_check
        %p190 = pneg %p189
      $region22: #{model_data_parallel_forward.1} parent=5 // pred_check_branch
        %192 = sbr.rel (%p190) target = $region24
      $region23: #{model_data_parallel_forward.1} parent=5 // pred_region
        // Predicated region
        $region25: #{model_data_parallel_forward.1} parent=23 // pred_check
          %p193 = pneg %p90
        $region26: #{model_data_parallel_forward.1} parent=23 // pred_check_branch
          %195 = sbr.rel (%p193) target = $region28
        $region27: #{model_data_parallel_forward.1} parent=23 // pred_region
          %s196 = smul.u32 %s19, 2
          %s197 = sadd.s32 %s196, %s20
          %s198 = smul.u32 2, %s197
          %p199 = scmp.lt.s32.totalorder %s198, 7
          %s200 = scalar_select %p199, %s198, 7
          %s201 = smul.addr %s200, 4
          %s202 = scalar_lea.vmem %s2, %s201
          %s203 = smul.u32 %s19, 2
          %s204 = sadd.s32 %s203, %s20
          %s205 = smul.u32 2, %s204
        $region28: #{model_data_parallel_forward.1} parent=23 // pred_fallthru
          _
        // Predicated region
        $region29: #{model_data_parallel_forward.1} parent=23 // pred_check
          %p206 = pneg %p120
        $region30: #{model_data_parallel_forward.1} parent=23 // pred_check_branch
          %208 = sbr.rel (%p206) target = $region32
        $region31: #{model_data_parallel_forward.1} parent=23 // pred_region
          %s209 = smul.u32 %s19, 2
          %s210 = sadd.s32 %s209, %s20
          %s211 = smul.u32 2, %s210
          %p212 = scmp.lt.s32.totalorder %s211, 7
          %s213 = scalar_select %p212, %s211, 7
          %s214 = smul.addr %s213, 4
          %s215 = scalar_lea.vmem %s3, %s214
          %s216 = smul.u32 %s19, 2
          %s217 = sadd.s32 %s216, %s20
          %s218 = smul.u32 2, %s217
        $region32: #{model_data_parallel_forward.1} parent=23 // pred_fallthru
          _
      $region24: #{model_data_parallel_forward.1} parent=5 // pred_fallthru
        _
      %p219 = scmp.le.s32.totalorder 1, %s12
      %p220 = scmp.lt.s32.totalorder %s12, 5
      %p221 = pnand %p219, %p220
      %p222 = pneg %p221
      // Predicated region
      $region33: #{model_data_parallel_forward.1} parent=5 // pred_check
        _
      $region34: #{model_data_parallel_forward.1} parent=5 // pred_check_branch
        %224 = sbr.rel (%p221) target = $region36
      $region35: #{model_data_parallel_forward.1} parent=5 // pred_region
        %s225 = ssub.s32 %s12, 1
        // Predicated region
        $region37: #{model_data_parallel_forward.1} parent=35 // pred_check
          %p226 = pneg %p45
        $region38: #{model_data_parallel_forward.1} parent=35 // pred_check_branch
          %228 = sbr.rel (%p226) target = $region40
        $region39: #{model_data_parallel_forward.1} parent=35 // pred_region
          %229 = dma.done [#allocation4], 64
        $region40: #{model_data_parallel_forward.1} parent=35 // pred_fallthru
          _
        // Predicated region
        $region41: #{model_data_parallel_forward.1} parent=35 // pred_check
          %p230 = pneg %p66
        $region42: #{model_data_parallel_forward.1} parent=35 // pred_check_branch
          %232 = sbr.rel (%p230) target = $region44
        $region43: #{model_data_parallel_forward.1} parent=35 // pred_region
          %233 = dma.done [#allocation6], 16
        $region44: #{model_data_parallel_forward.1} parent=35 // pred_fallthru
          _
        %234 = sfence
        %p235 = pneg %p45
        %p236 = pneg %p42
        %p237 = pneg %p66
        %p238 = pneg %p63
        %s239 = smul.u32 %s21, 2
        %s240 = sadd.s32 %s239, %s22
        %s241 = smul.u32 2, %s240
        %p242 = scmp.lt.s32.totalorder %s241, 7
        %s243 = scalar_select %p242, %s241, 7
        %s244 = smul.addr %s243, 4
        %s245 = scalar_lea.vmem %s2, %s244
        %p246 = pneg %p96
        %p247 = pneg %p93
        %s248 = smul.u32 %s21, 2
        %s249 = sadd.s32 %s248, %s22
        %s250 = smul.u32 2, %s249
        %p251 = scmp.lt.s32.totalorder %s250, 7
        %s252 = scalar_select %p251, %s250, 7
        %s253 = smul.addr %s252, 4
        %s254 = scalar_lea.vmem %s3, %s253
        %p255 = pneg %p126
        %p256 = pneg %p123
        %p257 = pneg %p152
        %p258 = pneg %p149
        %p259 = scmp.lt.s32.totalorder %s21, 1
        %s260 = scalar_select %p259, %s21, 1
        %s261 = scalar_lea.vmem %s4, %s260
        %s262 = smul.u32 %s21, 2
        %s263 = sadd.s32 %s262, %s22
        %s264 = smul.u32 2, %s263
        %p265 = scmp.lt.s32.totalorder %s264, 7
        %s266 = scalar_select %p265, %s264, 7
        %s267 = smul.addr %s266, 4
        %s268 = scalar_lea.vmem %s2, %s267
        %s269 = smul.u32 %s21, 2
        %s270 = sadd.s32 %s269, %s22
        %s271 = smul.u32 2, %s270
        %s272 = smul.u32 %s21, 2
        %s273 = sadd.s32 %s272, %s22
        %s274 = smul.u32 2, %s273
        %p275 = scmp.lt.s32.totalorder %s274, 7
        %s276 = scalar_select %p275, %s274, 7
        %s277 = smul.addr %s276, 4
        %s278 = scalar_lea.vmem %s3, %s277
        %s279 = smul.u32 %s21, 2
        %s280 = sadd.s32 %s279, %s22
        %s281 = smul.u32 2, %s280
        %p282 = scmp.lt.s32.totalorder %s21, 1
        %s283 = scalar_select %p282, %s21, 1
        %s284 = scalar_lea.vmem %s4, %s283
        %p285 = scmp.eq.s32.totalorder %s22, 0
        // Predicated region
        $region45: #{model_data_parallel_forward.1} parent=35 // pred_check
          %p286 = pneg %p285
        $region46: #{model_data_parallel_forward.1} parent=35 // pred_check_branch
          %288 = sbr.rel (%p286) target = $region48
        $region47: #{model_data_parallel_forward.1} parent=35 // pred_region
          %289 = vst [vmem:[#allocation2] sm:$0xff] 0.0
          %290 = vst [vmem:[#allocation2 + $0x8] sm:$0xff] 0.0
        $region48: #{model_data_parallel_forward.1} parent=35 // pred_fallthru
          _
        %v291 = vld [vmem:[%s268] sm:$0x1]
        %v292 = vld [vmem:[%s268 + $0x4] sm:$0x1]
        %v293 = vunpack.c.l.bf16 %v291
        %v294 = vunpack.c.l.bf16 %v292
        %v295 = vld [vmem:[%s268] sm:$0x2]
        %v296 = vld [vmem:[%s268 + $0x4] sm:$0x2]
        %v297 = vunpack.c.l.bf16 %v295
        %v298 = vunpack.c.l.bf16 %v296
        %v299 = vld [vmem:[%s268] sm:$0x4]
        %v300 = vld [vmem:[%s268 + $0x4] sm:$0x4]
        %v301 = vunpack.c.l.bf16 %v299
        %v302 = vunpack.c.l.bf16 %v300
        %v303 = vld [vmem:[%s268] sm:$0x8]
        %v304 = vld [vmem:[%s268 + $0x4] sm:$0x8]
        %v305 = vunpack.c.l.bf16 %v303
        %v306 = vunpack.c.l.bf16 %v304
        %s307 = sld [smem:[#allocation3]]
        %v308 = vstv %s307
        %v309 = vmul.f32 %v293, %v308
        %v310 = vmul.f32 %v294, %v308
        %s311 = sld [smem:[#allocation5]]
        %v312 = vstv %s311
        %v313 = vadd.f32 %v309, %v312
        %v314 = vadd.f32 %v310, %v312
        %s315 = sld [smem:[#allocation3 + $0x1]]
        %v316 = vstv %s315
        %v317 = vmul.f32 %v297, %v316
        %v318 = vmul.f32 %v298, %v316
        %v321 = vrot.slane %v317, 2
        %v322 = vrot.slane %v318, 2
        %v325 = vadd.f32 %v313, %v321
        %v326 = vadd.f32 %v314, %v322
        %s327 = sld [smem:[#allocation3 + $0x2]]
        %v328 = vstv %s327
        %v329 = vmul.f32 %v301, %v328
        %v330 = vmul.f32 %v302, %v328
        %v333 = vrot.slane %v329, 4
        %v334 = vrot.slane %v330, 4
        %v337 = vadd.f32 %v325, %v333
        %v338 = vadd.f32 %v326, %v334
        %s339 = sld [smem:[#allocation3 + $0x3]]
        %v340 = vstv %s339
        %v341 = vmul.f32 %v305, %v340
        %v342 = vmul.f32 %v306, %v340
        %v345 = vrot.slane %v341, 6
        %v346 = vrot.slane %v342, 6
        %v349 = vadd.f32 %v337, %v345
        %v350 = vadd.f32 %v338, %v346
        %v351 = vld [vmem:[%s278] sm:$0x1]
        %v352 = vld [vmem:[%s278 + $0x4] sm:$0x1]
        %v353 = vunpack.c.l.bf16 %v351
        %v354 = vunpack.c.l.bf16 %v352
        %v355 = vsub.f32 %v349, %v353
        %v356 = vsub.f32 %v350, %v354
        %v357 = vld [vmem:[#allocation2] sm:$0x3]
        %v358 = vld [vmem:[#allocation2 + $0x8] sm:$0x3]
        %v359 = vmul.f32 %v355, %v355
        %v360 = vmul.f32 %v356, %v356
        %v361 = vadd.f32 %v357, %v359
        %v362 = vadd.f32 %v358, %v360
        %363 = vst [vmem:[#allocation2] sm:$0x3] %v361
        %364 = vst [vmem:[#allocation2 + $0x8] sm:$0x3] %v362
        %s365 = sld [smem:[#allocation3 + $0x80]]
        %v366 = vstv %s365
        %v367 = vmul.f32 %v293, %v366
        %v368 = vmul.f32 %v294, %v366
        %s369 = sld [smem:[#allocation5 + $0x1]]
        %v370 = vstv %s369
        %v371 = vadd.f32 %v367, %v370
        %v372 = vadd.f32 %v368, %v370
        %s373 = sld [smem:[#allocation3 + $0x81]]
        %v374 = vstv %s373
        %v375 = vmul.f32 %v297, %v374
        %v376 = vmul.f32 %v298, %v374
        %v379 = vrot.slane %v375, 2
        %v380 = vrot.slane %v376, 2
        %v383 = vadd.f32 %v371, %v379
        %v384 = vadd.f32 %v372, %v380
        %s385 = sld [smem:[#allocation3 + $0x82]]
        %v386 = vstv %s385
        %v387 = vmul.f32 %v301, %v386
        %v388 = vmul.f32 %v302, %v386
        %v391 = vrot.slane %v387, 4
        %v392 = vrot.slane %v388, 4
        %v395 = vadd.f32 %v383, %v391
        %v396 = vadd.f32 %v384, %v392
        %s397 = sld [smem:[#allocation3 + $0x83]]
        %v398 = vstv %s397
        %v399 = vmul.f32 %v305, %v398
        %v400 = vmul.f32 %v306, %v398
        %v403 = vrot.slane %v399, 6
        %v404 = vrot.slane %v400, 6
        %v407 = vadd.f32 %v395, %v403
        %v408 = vadd.f32 %v396, %v404
        %v409 = vld [vmem:[%s278] sm:$0x2]
        %v410 = vld [vmem:[%s278 + $0x4] sm:$0x2]
        %v411 = vunpack.c.l.bf16 %v409
        %v412 = vunpack.c.l.bf16 %v410
        %v415 = vrot.slane %v411, 2
        %v416 = vrot.slane %v412, 2
        %v419 = vsub.f32 %v407, %v415
        %v420 = vsub.f32 %v408, %v416
        %v421 = vld [vmem:[#allocation2 + $0x2] sm:$0x3]
        %v422 = vld [vmem:[#allocation2 + $0xa] sm:$0x3]
        %v423 = vmul.f32 %v419, %v419
        %v424 = vmul.f32 %v420, %v420
        %v425 = vadd.f32 %v421, %v423
        %v426 = vadd.f32 %v422, %v424
        %427 = vst [vmem:[#allocation2 + $0x2] sm:$0x3] %v425
        %428 = vst [vmem:[#allocation2 + $0xa] sm:$0x3] %v426
        %s429 = sld [smem:[#allocation3 + $0x100]]
        %v430 = vstv %s429
        %v431 = vmul.f32 %v293, %v430
        %v432 = vmul.f32 %v294, %v430
        %s433 = sld [smem:[#allocation5 + $0x2]]
        %v434 = vstv %s433
        %v435 = vadd.f32 %v431, %v434
        %v436 = vadd.f32 %v432, %v434
        %s437 = sld [smem:[#allocation3 + $0x101]]
        %v438 = vstv %s437
        %v439 = vmul.f32 %v297, %v438
        %v440 = vmul.f32 %v298, %v438
        %v443 = vrot.slane %v439, 2
        %v444 = vrot.slane %v440, 2
        %v447 = vadd.f32 %v435, %v443
        %v448 = vadd.f32 %v436, %v444
        %s449 = sld [smem:[#allocation3 + $0x102]]
        %v450 = vstv %s449
        %v451 = vmul.f32 %v301, %v450
        %v452 = vmul.f32 %v302, %v450
        %v455 = vrot.slane %v451, 4
        %v456 = vrot.slane %v452, 4
        %v459 = vadd.f32 %v447, %v455
        %v460 = vadd.f32 %v448, %v456
        %s461 = sld [smem:[#allocation3 + $0x103]]
        %v462 = vstv %s461
        %v463 = vmul.f32 %v305, %v462
        %v464 = vmul.f32 %v306, %v462
        %v467 = vrot.slane %v463, 6
        %v468 = vrot.slane %v464, 6
        %v471 = vadd.f32 %v459, %v467
        %v472 = vadd.f32 %v460, %v468
        %v473 = vld [vmem:[%s278] sm:$0x4]
        %v474 = vld [vmem:[%s278 + $0x4] sm:$0x4]
        %v475 = vunpack.c.l.bf16 %v473
        %v476 = vunpack.c.l.bf16 %v474
        %v479 = vrot.slane %v475, 4
        %v480 = vrot.slane %v476, 4
        %v483 = vsub.f32 %v471, %v479
        %v484 = vsub.f32 %v472, %v480
        %v485 = vld [vmem:[#allocation2 + $0x4] sm:$0x3]
        %v486 = vld [vmem:[#allocation2 + $0xc] sm:$0x3]
        %v487 = vmul.f32 %v483, %v483
        %v488 = vmul.f32 %v484, %v484
        %v489 = vadd.f32 %v485, %v487
        %v490 = vadd.f32 %v486, %v488
        %491 = vst [vmem:[#allocation2 + $0x4] sm:$0x3] %v489
        %492 = vst [vmem:[#allocation2 + $0xc] sm:$0x3] %v490
        %s493 = sld [smem:[#allocation3 + $0x180]]
        %v494 = vstv %s493
        %v495 = vmul.f32 %v293, %v494
        %v496 = vmul.f32 %v294, %v494
        %s497 = sld [smem:[#allocation5 + $0x3]]
        %v498 = vstv %s497
        %v499 = vadd.f32 %v495, %v498
        %v500 = vadd.f32 %v496, %v498
        %s501 = sld [smem:[#allocation3 + $0x181]]
        %v502 = vstv %s501
        %v503 = vmul.f32 %v297, %v502
        %v504 = vmul.f32 %v298, %v502
        %v507 = vrot.slane %v503, 2
        %v508 = vrot.slane %v504, 2
        %v511 = vadd.f32 %v499, %v507
        %v512 = vadd.f32 %v500, %v508
        %s513 = sld [smem:[#allocation3 + $0x182]]
        %v514 = vstv %s513
        %v515 = vmul.f32 %v301, %v514
        %v516 = vmul.f32 %v302, %v514
        %v519 = vrot.slane %v515, 4
        %v520 = vrot.slane %v516, 4
        %v523 = vadd.f32 %v511, %v519
        %v524 = vadd.f32 %v512, %v520
        %s525 = sld [smem:[#allocation3 + $0x183]]
        %v526 = vstv %s525
        %v527 = vmul.f32 %v305, %v526
        %v528 = vmul.f32 %v306, %v526
        %v531 = vrot.slane %v527, 6
        %v532 = vrot.slane %v528, 6
        %v535 = vadd.f32 %v523, %v531
        %v536 = vadd.f32 %v524, %v532
        %v537 = vld [vmem:[%s278] sm:$0x8]
        %v538 = vld [vmem:[%s278 + $0x4] sm:$0x8]
        %v539 = vunpack.c.l.bf16 %v537
        %v540 = vunpack.c.l.bf16 %v538
        %v543 = vrot.slane %v539, 6
        %v544 = vrot.slane %v540, 6
        %v547 = vsub.f32 %v535, %v543
        %v548 = vsub.f32 %v536, %v544
        %v549 = vld [vmem:[#allocation2 + $0x6] sm:$0x3]
        %v550 = vld [vmem:[#allocation2 + $0xe] sm:$0x3]
        %v551 = vmul.f32 %v547, %v547
        %v552 = vmul.f32 %v548, %v548
        %v553 = vadd.f32 %v549, %v551
        %v554 = vadd.f32 %v550, %v552
        %555 = vst [vmem:[#allocation2 + $0x6] sm:$0x3] %v553
        %556 = vst [vmem:[#allocation2 + $0xe] sm:$0x3] %v554
        %p557 = scmp.eq.s32.totalorder %s22, 1
        // Predicated region
        $region49: #{model_data_parallel_forward.1} parent=35 // pred_check
          %p558 = pneg %p557
        $region50: #{model_data_parallel_forward.1} parent=35 // pred_check_branch
          %560 = sbr.rel (%p558) target = $region52
        $region51: #{model_data_parallel_forward.1} parent=35 // pred_region
          %v561 = vld [vmem:[#allocation2] sm:$0xff]
          %v562 = vld [vmem:[#allocation2 + $0x8] sm:$0xff]
          %v563 = vadd.f32 %v561, %v562
          %564 = vadd.xlane.f32.xlu0 %v563
          %v565 = vpop.xlane.xlu0 %564
          %v566 = vrot.slane %v565, 4
          %v567 = vadd.f32 %v565, %v566
          %v568 = vrot.slane %v567, 2
          %v569 = vadd.f32 %v567, %v568
          %v570 = vrot.slane %v569, 1
          %v571 = vadd.f32 %v569, %v570
          %s572 = vtos %v571
          %v573 = vstv %s572
          %vm574 = vcmask 0
          %575 = vst.msk [vmem:[%s284] sm:$0x1] %vm574, %v573
        $region52: #{model_data_parallel_forward.1} parent=35 // pred_fallthru
          _
        %p576 = scmp.lt.s32.totalorder %s21, 1
        %s577 = scalar_select %p576, %s21, 1
        %s578 = scalar_lea.vmem %s4, %s577
        // Predicated region
        $region53: #{model_data_parallel_forward.1} parent=35 // pred_check
          %p579 = pneg %p149
        $region54: #{model_data_parallel_forward.1} parent=35 // pred_check_branch
          %581 = sbr.rel (%p579) target = $region56
        $region55: #{model_data_parallel_forward.1} parent=35 // pred_region
          _
        $region56: #{model_data_parallel_forward.1} parent=35 // pred_fallthru
          _
      $region36: #{model_data_parallel_forward.1} parent=5 // pred_fallthru
        _
      %p582 = scmp.le.s32.totalorder 2, %s12
      // Predicated region
      $region57: #{model_data_parallel_forward.1} parent=5 // pred_check
        %p583 = pneg %p582
      $region58: #{model_data_parallel_forward.1} parent=5 // pred_check_branch
        %585 = sbr.rel (%p583) target = $region60
      $region59: #{model_data_parallel_forward.1} parent=5 // pred_region
        %s586 = ssub.s32 %s12, 2
        // Predicated region
        $region61: #{model_data_parallel_forward.1} parent=59 // pred_check
          %p587 = pneg %p155
        $region62: #{model_data_parallel_forward.1} parent=59 // pred_check_branch
          %589 = sbr.rel (%p587) target = $region64
        $region63: #{model_data_parallel_forward.1} parent=59 // pred_region
          %p590 = scmp.lt.s32.totalorder %s23, 1
          %s591 = scalar_select %p590, %s23, 1
          %s592 = scalar_lea.vmem %s4, %s591
        $region64: #{model_data_parallel_forward.1} parent=59 // pred_fallthru
          _
      $region60: #{model_data_parallel_forward.1} parent=5 // pred_fallthru
        _
    $region6: #{model_data_parallel_forward.1} parent=1 // loop_footer
      %s16 = sadd.s32 1, %s12
    $region7: #{model_data_parallel_forward.1} parent=1 // loop_footer_branch
      %11 = sbr.rel target = $region3
    $region8: #{model_data_parallel_forward.1} parent=1 // loop_exit
      _
    %593 = vsyncpa [#allocation4], 1
    %s594 = scalar_lea.sflag [#allocation4], 1
    %595 = vsyncpa %s594, 1
    %596 = vsyncpa [#allocation6], 1

</llo_original>
